<compile_context>
chip_gen: v7x
topology: tpu7x:2x2x1
jax: 0.10.0
libtpu: 0.0.40
codegen_flags: <defaults>
</compile_context>

<pallas_src>
import functools

import jax
import jax.numpy as jnp
from jax import lax
from jax.experimental import pallas as pl
from jax.experimental.pallas import tpu as pltpu


# --------------------------------------------------------------------------- #
# Kernels
# --------------------------------------------------------------------------- #
def _proj_kernel(x_ref, w_ref, b_ref, qkv_ref):
    """qkv tile = relu(W1_folded @ x_tile + b1), stored bf16 as (Cr, tq)."""
    x = x_ref[0].astype(jnp.bfloat16)                               # (C, tq)
    y = jnp.dot(w_ref[...], x, preferred_element_type=jnp.float32)  # (Cr, tq) f32
    y = jnp.maximum(y + b_ref[...], 0.0)                            # folded-BN bias + ReLU
    qkv_ref[0] = y.astype(qkv_ref.dtype)


def _attn_kernel(q_ref, kv_ref, w_out_ref, b2_ref, o_ref, *, hw_real, bf16_exp):
    q = q_ref[0]                                                    # (Cr, tq)     bf16
    kv = kv_ref[0]                                                  # (Cr, HW_pad) bf16
    hw_pad = kv.shape[1]

    # ---- attention logits: contract Cr (dim 0 of both operands) ------------
    logits = lax.dot_general(
        q, kv, dimension_numbers=(((0,), (0,)), ((), ())),
        preferred_element_type=jnp.float32)                         # (tq, HW_pad) f32

    # ---- mask padded key columns (static no-op when HW % 128 == 0) ---------
    if hw_real != hw_pad:
        col = lax.broadcasted_iota(jnp.int32, logits.shape, 1)
        logits = jnp.where(col < hw_real, logits, jnp.float32(-1e30))

    # ---- softmax (numerator only; denominator folded into the PV result) ---
    m = jnp.max(logits, axis=-1, keepdims=True)
    shifted = logits - m
    if bf16_exp:
        # v6e / v7x: bf16 EUP path; p is needed in bf16 for the MXU anyway.
        p = jnp.exp(shifted.astype(jnp.bfloat16))                   # (tq, HW_pad) bf16
        p_mx = p
    else:
        # v5e: no bf16 VPU/EUP -> keep exp in f32.
        p = jnp.exp(shifted)                                        # (tq, HW_pad) f32
        p_mx = p.astype(jnp.bfloat16)
    denom = jnp.sum(p, axis=-1, keepdims=True, dtype=jnp.float32)   # (tq, 1) f32

    # ---- attention @ value; (tq, Cr) is tiny/transient and lets the (tq, 1)
    # ---- denominator broadcast without a lane<->sublane relayout -----------
    pv = lax.dot_general(
        p_mx, kv, dimension_numbers=(((1,), (1,)), ((), ())),
        preferred_element_type=jnp.float32)                         # (tq, Cr) f32
    pv = pv * pl.reciprocal(denom, approx=True)                     # softmax normalize

    # ---- conv_out (1x1, BN scale folded) + bias + ReLU, (C, tq) lane-dense --
    out = lax.dot_general(
        w_out_ref[...], pv.astype(w_out_ref.dtype),
        dimension_numbers=(((1,), (1,)), ((), ())),
        preferred_element_type=jnp.float32)                         # (C, tq) f32
    out = jnp.maximum(out + b2_ref[...], 0.0)
    o_ref[0] = out.astype(o_ref.dtype)


# --------------------------------------------------------------------------- #
# Wrapper
# --------------------------------------------------------------------------- #
def _tpu_flavor():
    try:
        kind = jax.devices()[0].device_kind.lower()
    except Exception:  # pragma: no cover - no device info
        kind = ""
    if "v7" in kind:
        return "v7"
    if "v6" in kind:
        return "v6"
    if "v5" in kind:
        return "v5"
    return "other"


def _pick_query_tile(hw_pad, c, cr, vmem_cap_bytes, tq_cap):
    """Largest 128-multiple query tile that divides hw_pad and fits the budget."""
    budget = int(0.75 * vmem_cap_bytes)
    fixed = 2 * cr * hw_pad * 2 + 2 * c * cr * 2 + (1 << 20)
    for t in (1024, 512, 256, 128):
        if t > tq_cap or hw_pad % t:
            continue
        per_tile = 4 * t * hw_pad * 4 + 2 * c * t * 4 + 2 * cr * t * 2
        if fixed + per_tile <= budget:
            return t
    return 128


@jax.jit
def gsa_forward(x_nchw, w_qkv, s1, b1, w_out, s2, b2):
    """x_nchw: (N, C, H, W) f32; w_qkv: (Cr, C); w_out: (C, Cr);
    s1/b1: (Cr,) and s2/b2: (C,) folded-BN scale/bias.  Returns (N, C, H, W)."""
    N, C, H, W = x_nchw.shape
    Cr = w_qkv.shape[0]
    HW = H * W
    HW_pad = ((HW + 127) // 128) * 128

    # -- generation-aware tiling / VMEM budget / exp precision ---------------
    flavor = _tpu_flavor()
    if flavor == "v7":                       # 64 MiB physical VMEM per TC
        vmem_cap = 48 << 20
        tq_cap = 256 if HW_pad >= 4096 else 512
        bf16_exp = True
    elif flavor == "v6":                     # 128 MiB VMEM, bf16 EUP
        vmem_cap = 96 << 20
        tq_cap = 1024
        bf16_exp = True
    elif flavor == "v5":                     # 128 MiB VMEM, no bf16 VPU/EUP
        vmem_cap = 96 << 20
        tq_cap = 1024
        bf16_exp = False
    else:                                    # unknown -> conservative
        vmem_cap = 48 << 20
        tq_cap = 512
        bf16_exp = False

    tq = _pick_query_tile(HW_pad, C, Cr, vmem_cap, tq_cap)
    num_q = HW_pad // tq

    # NCHW -> (N, C, HW) is a pure reshape; zero-pad HW up to a 128-multiple.
    x = x_nchw.reshape(N, C, HW).astype(jnp.float32)
    if HW_pad != HW:
        x = jnp.pad(x, ((0, 0), (0, 0), (0, HW_pad - HW)))

    # Fold the eval-mode BN scales into the 1x1-conv weights (bias stays).
    w1 = (w_qkv * s1[:, None]).astype(jnp.bfloat16)                 # (Cr, C)
    b1_r = b1.reshape(Cr, 1).astype(jnp.float32)
    w2 = (w_out * s2[:, None]).astype(jnp.bfloat16)                 # (C, Cr)
    b2_r = b2.reshape(C, 1).astype(jnp.float32)

    # ---- kernel 1: shared q/k/v projection -> (N, Cr, HW_pad) bf16 ---------
    proj_vmem = int(min(max(2 * C * tq * 4 + 2 * Cr * tq * 2
                            + 2 * Cr * C * 2 + (2 << 20), 16 << 20), vmem_cap))
    qkv = pl.pallas_call(
        _proj_kernel,
        out_shape=jax.ShapeDtypeStruct((N, Cr, HW_pad), jnp.bfloat16),
        grid_spec=pltpu.PrefetchScalarGridSpec(
            num_scalar_prefetch=0,
            grid=(N, num_q),
            in_specs=[
                pl.BlockSpec((1, C, tq), lambda n, q: (n, 0, q)),   # x (f32)
                pl.BlockSpec((Cr, C), lambda n, q: (0, 0)),         # folded W1
                pl.BlockSpec((Cr, 1), lambda n, q: (0, 0)),         # bn1 bias
            ],
            out_specs=pl.BlockSpec((1, Cr, tq), lambda n, q: (n, 0, q)),
        ),
        compiler_params=pltpu.CompilerParams(
            dimension_semantics=("parallel", "parallel"),
            vmem_limit_bytes=proj_vmem),
    )(x, w1, b1_r)

    # ---- kernel 2: attention + conv_out, flash-style query tiling ----------
    attn_est = (2 * Cr * HW_pad * 2        # resident k/v block (double-buffered)
                + 2 * Cr * tq * 2          # query tile
                + 2 * C * tq * 4           # output block
                + 4 * tq * HW_pad * 4      # logits / exp / mask temporaries
                + 2 * C * Cr * 2 + (2 << 20))
    attn_vmem = int(min(max(attn_est, 16 << 20), vmem_cap))

    attn_kernel = functools.partial(_attn_kernel, hw_real=HW, bf16_exp=bf16_exp)
    out = pl.pallas_call(
        attn_kernel,
        out_shape=jax.ShapeDtypeStruct((N, C, HW_pad), jnp.float32),
        grid_spec=pltpu.PrefetchScalarGridSpec(
            num_scalar_prefetch=0,
            grid=(N, num_q),
            in_specs=[
                pl.BlockSpec((1, Cr, tq), lambda n, q: (n, 0, q)),      # query tile
                pl.BlockSpec((1, Cr, HW_pad), lambda n, q: (n, 0, 0)),  # full k/v (resident per n)
                pl.BlockSpec((C, Cr), lambda n, q: (0, 0)),             # folded W_out
                pl.BlockSpec((C, 1), lambda n, q: (0, 0)),              # bn2 bias
            ],
            out_specs=pl.BlockSpec((1, C, tq), lambda n, q: (n, 0, q)),
        ),
        compiler_params=pltpu.CompilerParams(
            dimension_semantics=("parallel", "parallel"),
            vmem_limit_bytes=attn_vmem),
    )(qkv, qkv, w2, b2_r)

    if HW_pad != HW:
        out = out[:, :, :HW]
    return out.reshape(N, C, H, W)


# --------------------------------------------------------------------------- #
# Reference / test
# --------------------------------------------------------------------------- #
def _fold_bn(gamma, beta, mean, var, eps=1e-5):
    scale = gamma / jnp.sqrt(var + eps)
    bias = beta - mean * scale
    return scale, bias


def _reference(x_nchw, w_qkv, s1, b1, w_out, s2, b2):
    """Plain-JAX f32 mirror of the PyTorch forward (eval-mode BN folded)."""
    N, C, H, W = x_nchw.shape
    HW = H * W
    x = x_nchw.reshape(N, C, HW)
    q = jnp.einsum("rc,nch->nrh", w_qkv, x)                         # (N, Cr, HW)
    q = jnp.maximum(q * s1[None, :, None] + b1[None, :, None], 0.0)
    attn = jax.nn.softmax(jnp.einsum("nri,nrj->nij", q, q), axis=-1)
    out = jnp.einsum("nij,nrj->nir", attn, q)                       # (N, HW, Cr)
    out = jnp.einsum("cr,nir->nci", w_out, out)                     # (N, C, HW)
    out = jnp.maximum(out * s2[None, :, None] + b2[None, :, None], 0.0)
    return out.reshape(N, C, H, W)


if __name__ == "__main__":
    rd_ratio = 8
    C = 32
    Cr = C // rd_ratio

    key = jax.random.PRNGKey(0)
    ks = jax.random.split(key, 12)

    # conv_query/key/value (shared): Conv2d(C, Cr, 1, bias=False) weight -> (Cr, C).
    w_qkv = 0.1 * jax.random.normal(ks[1], (Cr, C), dtype=jnp.float32)
    bn1_gamma = 1.0 + 0.1 * jax.random.normal(ks[2], (Cr,), dtype=jnp.float32)
    bn1_beta = 0.1 * jax.random.normal(ks[3], (Cr,), dtype=jnp.float32)
    bn1_mean = 0.05 * jax.random.normal(ks[4], (Cr,), dtype=jnp.float32)
    bn1_var = jnp.abs(1.0 + 0.1 * jax.random.normal(ks[5], (Cr,), dtype=jnp.float32))

    # conv_out: Conv2d(Cr, C, 1, bias=False) weight -> (C, Cr).
    w_out = 0.1 * jax.random.normal(ks[6], (C, Cr), dtype=jnp.float32)
    bn2_gamma = 1.0 + 0.1 * jax.random.normal(ks[7], (C,), dtype=jnp.float32)
    bn2_beta = 0.1 * jax.random.normal(ks[8], (C,), dtype=jnp.float32)
    bn2_mean = 0.05 * jax.random.normal(ks[9], (C,), dtype=jnp.float32)
    bn2_var = jnp.abs(1.0 + 0.1 * jax.random.normal(ks[10], (C,), dtype=jnp.float32))

    s1, b1 = _fold_bn(bn1_gamma, bn1_beta, bn1_mean, bn1_var)
    s2, b2 = _fold_bn(bn2_gamma, bn2_beta, bn2_mean, bn2_var)

    # Case 1: HW=64 (padded to 128, single query tile).
    # Case 2: HW=320 (padded to 384, multiple query tiles + resident k/v block).
    cases = [(2, 8, 8, ks[0]), (1, 16, 20, ks[11])]
    for N, H, W, xkey in cases:
        x = jax.random.normal(xkey, (N, C, H, W), dtype=jnp.float32)
        out = jax.block_until_ready(gsa_forward(x, w_qkv, s1, b1, w_out, s2, b2))
        ref = _reference(x, w_qkv, s1, b1, w_out, s2, b2)
        assert out.shape == (N, C, H, W)
        max_err = float(jnp.max(jnp.abs(out - ref)))
        # bf16 MXU operands (and bf16 exp on v6e/v7x) vs. the pure-f32 reference.
        assert jnp.allclose(out, ref, atol=2e-2, rtol=2e-2), (
            f"mismatch vs reference for N={N},H={H},W={W} (max abs err {max_err})")

    print("KERNEL_OK")
</pallas_src>

<mosaic_0001>
module attributes {stable_mosaic.version = 11 : i64} {
  func.func @_attn_kernel(%arg0: i32, %arg1: i32, %arg2: memref<1x4x128xbf16, #tpu.memory_space<vmem>>, %arg3: memref<1x4x128xbf16, #tpu.memory_space<vmem>>, %arg4: memref<32x4xbf16, #tpu.memory_space<vmem>>, %arg5: memref<32x1xf32, #tpu.memory_space<vmem>>, %arg6: memref<1x32x128xf32, #tpu.memory_space<vmem>>) attributes {dimension_semantics = [#tpu.dimension_semantics<parallel>, #tpu.dimension_semantics<parallel>], iteration_bounds = array<i64: 2, 1>, scalar_prefetch = 0 : i64, scratch_operands = 0 : i64, tpu.core_type = #tpu.core_type<tc>, window_params = [{transform_indices = @transform_0, window_bounds = array<i64: 1, 4, 128>}, {transform_indices = @transform_1, window_bounds = array<i64: 1, 4, 128>}, {pipeline_mode = #tpu.pipeline_mode<synchronous>, transform_indices = @transform_2, window_bounds = array<i64: 32, 4>}, {pipeline_mode = #tpu.pipeline_mode<synchronous>, transform_indices = @transform_3, window_bounds = array<i64: 32, 1>}, {transform_indices = @transform_4, window_bounds = array<i64: 1, 32, 128>}]} {
    %c0 = arith.constant 0 : index
    %c0_0 = arith.constant 0 : index
    %c0_1 = arith.constant 0 : index
    %0 = vector.load %arg2[%c0, %c0_0, %c0_1] : memref<1x4x128xbf16, #tpu.memory_space<vmem>>, vector<1x4x128xbf16>
    %1 = vector.shape_cast %0 : vector<1x4x128xbf16> to vector<4x128xbf16>
    %c0_2 = arith.constant 0 : index
    %c0_3 = arith.constant 0 : index
    %c0_4 = arith.constant 0 : index
    %2 = vector.load %arg3[%c0_2, %c0_3, %c0_4] : memref<1x4x128xbf16, #tpu.memory_space<vmem>>, vector<1x4x128xbf16>
    %3 = vector.shape_cast %2 : vector<1x4x128xbf16> to vector<4x128xbf16>
    %cst = arith.constant dense<0.000000e+00> : vector<128x128xf32>
    %4 = tpu.matmul %1, %3, %cst {dimension_numbers = #tpu.dot_dimension_numbers<[0], [0], [1], [1], [0, 1, 1, 1], [], []>} : vector<4x128xbf16>, vector<4x128xbf16>, vector<128x128xf32> -> vector<128x128xf32>
    %5 = tpu.iota {dimensions = array<i32: 1>} : vector<128x128xi32>
    %c64_i32 = arith.constant 64 : i32
    %6 = vector.broadcast %c64_i32 : i32 to vector<128x128xi32>
    %7 = arith.cmpi slt, %5, %6 : vector<128x128xi32>
    %cst_5 = arith.constant -1.000000e+30 : f32
    %8 = vector.broadcast %cst_5 : f32 to vector<128x128xf32>
    %9 = arith.select %7, %4, %8 : vector<128x128xi1>, vector<128x128xf32>
    %cst_6 = arith.constant dense<0xFF800000> : vector<128xf32>
    %10 = vector.multi_reduction <maximumf>, %9, %cst_6 [1] : vector<128x128xf32> to vector<128xf32>
    %11 = vector.shape_cast %10 : vector<128xf32> to vector<128x1xf32>
    %12 = vector.broadcast %11 : vector<128x1xf32> to vector<128x128xf32>
    %13 = arith.subf %9, %12 : vector<128x128xf32>
    %14 = math.exp %13 : vector<128x128xf32>
    %15 = arith.truncf %14 : vector<128x128xf32> to vector<128x128xbf16>
    %cst_7 = arith.constant dense<0.000000e+00> : vector<128xf32>
    %16 = vector.multi_reduction <add>, %14, %cst_7 [1] : vector<128x128xf32> to vector<128xf32>
    %17 = vector.shape_cast %16 : vector<128xf32> to vector<128x1xf32>
    %cst_8 = arith.constant dense<0.000000e+00> : vector<128x4xf32>
    %18 = tpu.matmul %15, %3, %cst_8 {dimension_numbers = #tpu.dot_dimension_numbers<[1], [1], [0], [0], [0, 0, 1, 0], [], []>} : vector<128x128xbf16>, vector<4x128xbf16>, vector<128x4xf32> -> vector<128x4xf32>
    %19 = tpu.reciprocal %17 {approx = true} : vector<128x1xf32> -> vector<128x1xf32>
    %20 = vector.broadcast %19 : vector<128x1xf32> to vector<128x4xf32>
    %21 = arith.mulf %18, %20 : vector<128x4xf32>
    %c0_9 = arith.constant 0 : index
    %c0_10 = arith.constant 0 : index
    %22 = vector.load %arg4[%c0_9, %c0_10] : memref<32x4xbf16, #tpu.memory_space<vmem>>, vector<32x4xbf16>
    %23 = arith.truncf %21 : vector<128x4xf32> to vector<128x4xbf16>
    %cst_11 = arith.constant dense<0.000000e+00> : vector<32x128xf32>
    %24 = tpu.matmul %22, %23, %cst_11 {dimension_numbers = #tpu.dot_dimension_numbers<[1], [1], [0], [0], [0, 0, 1, 0], [], []>} : vector<32x4xbf16>, vector<128x4xbf16>, vector<32x128xf32> -> vector<32x128xf32>
    %c0_12 = arith.constant 0 : index
    %c0_13 = arith.constant 0 : index
    %25 = vector.load %arg5[%c0_12, %c0_13] : memref<32x1xf32, #tpu.memory_space<vmem>>, vector<32x1xf32>
    %26 = vector.broadcast %25 : vector<32x1xf32> to vector<32x128xf32>
    %27 = arith.addf %24, %26 : vector<32x128xf32>
    %cst_14 = arith.constant 0.000000e+00 : f32
    %28 = vector.broadcast %cst_14 : f32 to vector<32x128xf32>
    %29 = arith.maximumf %27, %28 : vector<32x128xf32>
    %c0_15 = arith.constant 0 : index
    %c0_16 = arith.constant 0 : index
    %c0_17 = arith.constant 0 : index
    %30 = vector.load %arg6[%c0_15, %c0_16, %c0_17] : memref<1x32x128xf32, #tpu.memory_space<vmem>>, vector<1x32x128xf32>
    %31 = vector.shape_cast %30 : vector<1x32x128xf32> to vector<32x128xf32>
    %32 = vector.shape_cast %29 : vector<32x128xf32> to vector<1x32x128xf32>
    tpu.vector_store %arg6[%c0_15, %c0_16, %c0_17], %32 {strides = array<i32>} : memref<1x32x128xf32, #tpu.memory_space<vmem>>, vector<1x32x128xf32>,
    return
  }
  func.func @transform_0(%arg0: i32, %arg1: i32) -> (i32, i32, i32) {
    %c0_i32 = arith.constant 0 : i32
    %c0_i32_0 = arith.constant 0 : i32
    return %arg0, %c0_i32, %arg1 : i32, i32, i32
  }
  func.func @transform_1(%arg0: i32, %arg1: i32) -> (i32, i32, i32) {
    %c0_i32 = arith.constant 0 : i32
    %c0_i32_0 = arith.constant 0 : i32
    %c0_i32_1 = arith.constant 0 : i32
    return %arg0, %c0_i32, %c0_i32_0 : i32, i32, i32
  }
  func.func @transform_2(%arg0: i32, %arg1: i32) -> (i32, i32) {
    %c0_i32 = arith.constant 0 : i32
    %c0_i32_0 = arith.constant 0 : i32
    %c0_i32_1 = arith.constant 0 : i32
    return %c0_i32, %c0_i32_0 : i32, i32
  }
  func.func @transform_3(%arg0: i32, %arg1: i32) -> (i32, i32) {
    %c0_i32 = arith.constant 0 : i32
    %c0_i32_0 = arith.constant 0 : i32
    %c0_i32_1 = arith.constant 0 : i32
    return %c0_i32, %c0_i32_0 : i32, i32
  }
  func.func @transform_4(%arg0: i32, %arg1: i32) -> (i32, i32, i32) {
    %c0_i32 = arith.constant 0 : i32
    %c0_i32_0 = arith.constant 0 : i32
    return %arg0, %c0_i32, %arg1 : i32, i32, i32
  }
}

module attributes {stable_mosaic.version = 11 : i64} {
  func.func @_proj_kernel(%arg0: i32, %arg1: i32, %arg2: memref<1x32x128xf32, #tpu.memory_space<vmem>>, %arg3: memref<4x32xbf16, #tpu.memory_space<vmem>>, %arg4: memref<4x1xf32, #tpu.memory_space<vmem>>, %arg5: memref<1x4x128xbf16, #tpu.memory_space<vmem>>) attributes {dimension_semantics = [#tpu.dimension_semantics<parallel>, #tpu.dimension_semantics<parallel>], iteration_bounds = array<i64: 2, 1>, scalar_prefetch = 0 : i64, scratch_operands = 0 : i64, tpu.core_type = #tpu.core_type<tc>, window_params = [{transform_indices = @transform_0, window_bounds = array<i64: 1, 32, 128>}, {pipeline_mode = #tpu.pipeline_mode<synchronous>, transform_indices = @transform_1, window_bounds = array<i64: 4, 32>}, {pipeline_mode = #tpu.pipeline_mode<synchronous>, transform_indices = @transform_2, window_bounds = array<i64: 4, 1>}, {transform_indices = @transform_3, window_bounds = array<i64: 1, 4, 128>}]} {
    %c0 = arith.constant 0 : index
    %c0_0 = arith.constant 0 : index
    %c0_1 = arith.constant 0 : index
    %0 = vector.load %arg2[%c0, %c0_0, %c0_1] : memref<1x32x128xf32, #tpu.memory_space<vmem>>, vector<1x32x128xf32>
    %1 = vector.shape_cast %0 : vector<1x32x128xf32> to vector<32x128xf32>
    %2 = arith.truncf %1 : vector<32x128xf32> to vector<32x128xbf16>
    %c0_2 = arith.constant 0 : index
    %c0_3 = arith.constant 0 : index
    %3 = vector.load %arg3[%c0_2, %c0_3] : memref<4x32xbf16, #tpu.memory_space<vmem>>, vector<4x32xbf16>
    %cst = arith.constant dense<0.000000e+00> : vector<4x128xf32>
    %4 = tpu.matmul %3, %2, %cst {dimension_numbers = #tpu.dot_dimension_numbers<[1], [0], [0], [1], [0, 0, 1, 1], [], []>} : vector<4x32xbf16>, vector<32x128xbf16>, vector<4x128xf32> -> vector<4x128xf32>
    %c0_4 = arith.constant 0 : index
    %c0_5 = arith.constant 0 : index
    %5 = vector.load %arg4[%c0_4, %c0_5] : memref<4x1xf32, #tpu.memory_space<vmem>>, vector<4x1xf32>
    %6 = vector.broadcast %5 : vector<4x1xf32> to vector<4x128xf32>
    %7 = arith.addf %4, %6 : vector<4x128xf32>
    %cst_6 = arith.constant 0.000000e+00 : f32
    %8 = vector.broadcast %cst_6 : f32 to vector<4x128xf32>
    %9 = arith.maximumf %7, %8 : vector<4x128xf32>
    %10 = arith.truncf %9 : vector<4x128xf32> to vector<4x128xbf16>
    %c0_7 = arith.constant 0 : index
    %c0_8 = arith.constant 0 : index
    %c0_9 = arith.constant 0 : index
    %11 = vector.load %arg5[%c0_7, %c0_8, %c0_9] : memref<1x4x128xbf16, #tpu.memory_space<vmem>>, vector<1x4x128xbf16>
    %12 = vector.shape_cast %11 : vector<1x4x128xbf16> to vector<4x128xbf16>
    %13 = vector.shape_cast %10 : vector<4x128xbf16> to vector<1x4x128xbf16>
    tpu.vector_store %arg5[%c0_7, %c0_8, %c0_9], %13 {strides = array<i32>} : memref<1x4x128xbf16, #tpu.memory_space<vmem>>, vector<1x4x128xbf16>,
    return
  }
  func.func @transform_0(%arg0: i32, %arg1: i32) -> (i32, i32, i32) {
    %c0_i32 = arith.constant 0 : i32
    %c0_i32_0 = arith.constant 0 : i32
    return %arg0, %c0_i32, %arg1 : i32, i32, i32
  }
  func.func @transform_1(%arg0: i32, %arg1: i32) -> (i32, i32) {
    %c0_i32 = arith.constant 0 : i32
    %c0_i32_0 = arith.constant 0 : i32
    %c0_i32_1 = arith.constant 0 : i32
    return %c0_i32, %c0_i32_0 : i32, i32
  }
  func.func @transform_2(%arg0: i32, %arg1: i32) -> (i32, i32) {
    %c0_i32 = arith.constant 0 : i32
    %c0_i32_0 = arith.constant 0 : i32
    %c0_i32_1 = arith.constant 0 : i32
    return %c0_i32, %c0_i32_0 : i32, i32
  }
  func.func @transform_3(%arg0: i32, %arg1: i32) -> (i32, i32, i32) {
    %c0_i32 = arith.constant 0 : i32
    %c0_i32_0 = arith.constant 0 : i32
    return %arg0, %c0_i32, %arg1 : i32, i32, i32
  }
}

</mosaic_0001>

<llo_original>
// kernel: gsa_forward.2
$region0: #{gsa_forward.2}
  #allocation0 [shape = 'u32[]', space=smem, size = 0x4, offset = 0x4, fixed_abs, tag = 'smem constant byte address 0x4 - core index']
  #allocation1 [shape = 'u32[144,128]{1,0:T(1,128)}', space=vmem, size = 0x12000, scoped, tag = 'internal scratch']
  %s0 = inlined_call_operand.vmem [shape: f32[2,32,128], index: 0, kind: input, shape index: {}]
  %s1 = inlined_call_operand.vmem [shape: bf16[4,32], index: 1, kind: input, shape index: {}]
  %s2 = inlined_call_operand.vmem [shape: f32[4,1], index: 2, kind: input, shape index: {}]
  %s3 = inlined_call_operand.vmem [shape: bf16[2,4,128], index: 3, kind: output, shape index: {}]
  %s4 = sld [smem:[#allocation0]]
  $region45: #{gsa_forward.2} parent=0
    _
  %s6 = ssub.s32 1, %s4
  %s7 = scalar_select 0, %s6, %s4
  loop: start=0, step=1, limit=4
  $region2: #{gsa_forward.2} parent=0 // loop_pre_header
    _
  $region3: #{gsa_forward.2} parent=0 // loop_header
    %s9 = sphi 0, %s13
    %p10 = scmp.ge.s32.totalorder %s9, 4
    %s16 = sphi 0, %s28
    %s17 = sphi 0, %s24
    %s18 = sphi 0, %s16
    %s19 = sphi 0, %s17
    %s20 = sphi 0, %s18
    %s21 = sphi 0, %s19
    %s33 = sphi 0, %s35
    %s36 = sphi 0, %s33
    %s37 = sphi 0, %s36
    %s53 = sphi 0, %s37
    %s57 = sphi 0, %s57
    %s59 = sphi 0, %s57
    %s60 = sphi 0, %s59
    %s74 = sphi 0, %s60
    %s78 = sphi 0, %s78
    %s80 = sphi 0, %s78
    %s81 = sphi 0, %s80
    %s95 = sphi 0, %s81
    %s103 = sphi 0, %s105
    %s106 = sphi 0, %s103
    %s107 = sphi 0, %s106
    %s123 = sphi 0, %s107
  $region4: #{gsa_forward.2} parent=0 // loop_header_branch
    %12 = sbr.rel (%p10) target = $region8
  $region5: #{gsa_forward.2} parent=0 // loop_body
    %s14 = ssub.s32 %s9, 1
    %s15 = ssub.s32 %s9, 2
    %s22 = sadd.s32 1, %s17
    %p23 = scmp.ge.s32.totalorder %s22, 1
    %s24 = scalar_select %p23, 0, %s22
    %s25 = sadd.s32 1, %s16
    %s26 = scalar_select %p23, %s25, %s16
    %p27 = scmp.ge.s32.totalorder %s26, 2
    %s28 = scalar_select %p27, 0, %s26
    %s29 = ssub.s32 %s16, %s28
    %s30 = ssub.s32 %s17, %s24
    %s31 = sor.u32 %s29, %s30
    %p32 = scmp.eq.s32.totalorder %s31, 0
    %s34 = sadd.s32 %s33, 1
    %s35 = scalar_select %p32, %s33, %s34
    %p38 = pneg %p32
    %p39 = scmp.eq.s32.totalorder %s9, 1
    %p40 = por %p38, %p39
    %p41 = scmp.ne.s32.totalorder %s33, %s36
    %p42 = scmp.eq.s32.totalorder %s9, 0
    %p43 = por %p41, %p42
    %p44 = scmp.ne.s32.totalorder %s33, %s36
    %p45 = scmp.eq.s32.totalorder %s14, 1
    %p46 = por %p44, %p45
    %p47 = scmp.ne.s32.totalorder %s36, %s37
    %p48 = scmp.eq.s32.totalorder %s14, 0
    %p49 = por %p47, %p48
    %p50 = scmp.ne.s32.totalorder %s36, %s37
    %p51 = scmp.eq.s32.totalorder %s15, 1
    %p52 = por %p50, %p51
    %p54 = scmp.ne.s32.totalorder %s37, %s53
    %p55 = scmp.eq.s32.totalorder %s15, 0
    %p56 = por %p54, %p55
    %s58 = sadd.s32 %s57, 1
    %p61 = scmp.eq.s32.totalorder %s9, 1
    %p62 = scmp.ne.s32.totalorder %s57, %s59
    %p63 = scmp.eq.s32.totalorder %s9, 0
    %p64 = por %p62, %p63
    %p65 = scmp.ne.s32.totalorder %s57, %s59
    %p66 = scmp.eq.s32.totalorder %s14, 1
    %p67 = por %p65, %p66
    %p68 = scmp.ne.s32.totalorder %s59, %s60
    %p69 = scmp.eq.s32.totalorder %s14, 0
    %p70 = por %p68, %p69
    %p71 = scmp.ne.s32.totalorder %s59, %s60
    %p72 = scmp.eq.s32.totalorder %s15, 1
    %p73 = por %p71, %p72
    %p75 = scmp.ne.s32.totalorder %s60, %s74
    %p76 = scmp.eq.s32.totalorder %s15, 0
    %p77 = por %p75, %p76
    %s79 = sadd.s32 %s78, 1
    %p82 = scmp.eq.s32.totalorder %s9, 1
    %p83 = scmp.ne.s32.totalorder %s78, %s80
    %p84 = scmp.eq.s32.totalorder %s9, 0
    %p85 = por %p83, %p84
    %p86 = scmp.ne.s32.totalorder %s78, %s80
    %p87 = scmp.eq.s32.totalorder %s14, 1
    %p88 = por %p86, %p87
    %p89 = scmp.ne.s32.totalorder %s80, %s81
    %p90 = scmp.eq.s32.totalorder %s14, 0
    %p91 = por %p89, %p90
    %p92 = scmp.ne.s32.totalorder %s80, %s81
    %p93 = scmp.eq.s32.totalorder %s15, 1
    %p94 = por %p92, %p93
    %p96 = scmp.ne.s32.totalorder %s81, %s95
    %p97 = scmp.eq.s32.totalorder %s15, 0
    %p98 = por %p96, %p97
    %s99 = ssub.s32 %s16, %s28
    %s100 = ssub.s32 %s17, %s24
    %s101 = sor.u32 %s99, %s100
    %p102 = scmp.eq.s32.totalorder %s101, 0
    %s104 = sadd.s32 %s103, 1
    %s105 = scalar_select %p102, %s103, %s104
    %p108 = pneg %p102
    %p109 = scmp.eq.s32.totalorder %s9, 1
    %p110 = por %p108, %p109
    %p111 = scmp.ne.s32.totalorder %s103, %s106
    %p112 = scmp.eq.s32.totalorder %s9, 0
    %p113 = por %p111, %p112
    %p114 = scmp.ne.s32.totalorder %s103, %s106
    %p115 = scmp.eq.s32.totalorder %s14, 1
    %p116 = por %p114, %p115
    %p117 = scmp.ne.s32.totalorder %s106, %s107
    %p118 = scmp.eq.s32.totalorder %s14, 0
    %p119 = por %p117, %p118
    %p120 = scmp.ne.s32.totalorder %s106, %s107
    %p121 = scmp.eq.s32.totalorder %s15, 1
    %p122 = por %p120, %p121
    %p124 = scmp.ne.s32.totalorder %s107, %s123
    %p125 = scmp.eq.s32.totalorder %s15, 0
    %p126 = por %p124, %p125
    %p127 = scmp.le.s32.totalorder 1, %s9
    %p128 = scmp.lt.s32.totalorder %s9, 3
    %p129 = pnand %p127, %p128
    %p130 = pneg %p129
    // Predicated region
    $region9: #{gsa_forward.2} parent=5 // pred_check
      _
    $region10: #{gsa_forward.2} parent=5 // pred_check_branch
      %132 = sbr.rel (%p129) target = $region12
    $region11: #{gsa_forward.2} parent=5 // pred_region
      %s133 = ssub.s32 %s9, 1
      // Predicated region
      $region13: #{gsa_forward.2} parent=11 // pred_check
        %p134 = pneg %p70
      $region14: #{gsa_forward.2} parent=11 // pred_check_branch
        %136 = sbr.rel (%p134) target = $region16
      $region15: #{gsa_forward.2} parent=11 // pred_region
        _
      $region16: #{gsa_forward.2} parent=11 // pred_fallthru
        _
      // Predicated region
      $region17: #{gsa_forward.2} parent=11 // pred_check
        %p137 = pneg %p91
      $region18: #{gsa_forward.2} parent=11 // pred_check_branch
        %139 = sbr.rel (%p137) target = $region20
      $region19: #{gsa_forward.2} parent=11 // pred_region
        _
      $region20: #{gsa_forward.2} parent=11 // pred_fallthru
        _
    $region12: #{gsa_forward.2} parent=5 // pred_fallthru
      _
    %p140 = scmp.lt.s32.totalorder %s9, 2
    // Predicated region
    $region21: #{gsa_forward.2} parent=5 // pred_check
      %p141 = pneg %p140
    $region22: #{gsa_forward.2} parent=5 // pred_check_branch
      %143 = sbr.rel (%p141) target = $region24
    $region23: #{gsa_forward.2} parent=5 // pred_region
      // Predicated region
      $region25: #{gsa_forward.2} parent=23 // pred_check
        %p144 = pneg %p43
      $region26: #{gsa_forward.2} parent=23 // pred_check_branch
        %146 = sbr.rel (%p144) target = $region28
      $region27: #{gsa_forward.2} parent=23 // pred_region
        %p147 = scmp.lt.s32.totalorder %s16, 1
        %s148 = scalar_select %p147, %s16, 1
        %p149 = scmp.lt.s32.totalorder %s17, 0
        %s150 = scalar_select %p149, %s17, 0
        %s151 = smul.addr %s148, 4
        %s152 = sadd.s32 %s150, %s151
        %s153 = smul.addr %s152, 8
        %s154 = scalar_lea.vmem %s0, %s153
      $region28: #{gsa_forward.2} parent=23 // pred_fallthru
        _
    $region24: #{gsa_forward.2} parent=5 // pred_fallthru
      _
    %p155 = scmp.le.s32.totalorder 1, %s9
    %p156 = scmp.lt.s32.totalorder %s9, 3
    %p157 = pnand %p155, %p156
    %p158 = pneg %p157
    // Predicated region
    $region29: #{gsa_forward.2} parent=5 // pred_check
      _
    $region30: #{gsa_forward.2} parent=5 // pred_check_branch
      %160 = sbr.rel (%p157) target = $region32
    $region31: #{gsa_forward.2} parent=5 // pred_region
      %s161 = ssub.s32 %s9, 1
      %p162 = scmp.lt.s32.totalorder %s18, 1
      %s163 = scalar_select %p162, %s18, 1
      %p164 = scmp.lt.s32.totalorder %s19, 0
      %s165 = scalar_select %p164, %s19, 0
      %s166 = smul.addr %s163, 4
      %s167 = sadd.s32 %s165, %s166
      %s168 = smul.addr %s167, 8
      %s169 = scalar_lea.vmem %s0, %s168
      %p170 = pneg %p49
      %p171 = pneg %p46
      %p172 = pneg %p70
      %p173 = pneg %p67
      %p174 = pneg %p91
      %p175 = pneg %p88
      %p176 = pneg %p119
      %p177 = pneg %p116
      %p178 = scmp.lt.s32.totalorder %s18, 1
      %s179 = scalar_select %p178, %s18, 1
      %p180 = scmp.lt.s32.totalorder %s19, 0
      %s181 = scalar_select %p180, %s19, 0
      %s182 = sadd.s32 %s181, %s179
      %s183 = smul.addr %s182, 2
      %s184 = scalar_lea.vmem %s3, %s183
      %p185 = scmp.lt.s32.totalorder %s18, 1
      %s186 = scalar_select %p185, %s18, 1
      %p187 = scmp.lt.s32.totalorder %s19, 0
      %s188 = scalar_select %p187, %s19, 0
      %s189 = smul.addr %s186, 4
      %s190 = sadd.s32 %s188, %s189
      %s191 = smul.addr %s190, 8
      %s192 = scalar_lea.vmem %s0, %s191
      %p193 = scmp.lt.s32.totalorder %s18, 1
      %s194 = scalar_select %p193, %s18, 1
      %p195 = scmp.lt.s32.totalorder %s19, 0
      %s196 = scalar_select %p195, %s19, 0
      %s197 = sadd.s32 %s196, %s194
      %s198 = smul.addr %s197, 2
      %s199 = scalar_lea.vmem %s3, %s198
      %v201 = vld [vmem:[%s192] sm:$0xff]
      %v202 = vld [vmem:[%s192 + $0x8] sm:$0xff]
      %v203 = vld [vmem:[%s192 + $0x10] sm:$0xff]
      %v204 = vld [vmem:[%s192 + $0x18] sm:$0xff]
      %v205 = vpack.c.bf16 %v202, %v201
      %v206 = vpack.c.bf16 %v204, %v203
      %v207 = vld [vmem:[%s1] sm:$0x3]
      %v208 = vld [vmem:[%s2] sm:$0xf]
      %210 = vset.pattern.permute.xlu0 0
      %211 = vperm.xlu0 %210, %v208
      %v212 = vpop.permute.xlu0 %211
      %vm214 = vcmask 261120
      %v216 = vsel %vm214, %v207, 0
      %218 = vmatprep.subr.bf16.mxu0 0
      %219 = vmatpush1.bf16.msra.mxu0 %v205
      %220 = vmatprep.subr.bf16.mxu0 0
      %221 = vmatpush1.bf16.msra.mxu0 %v206
      %222 = vmatprep.subr.bf16.mxu0 0
      %223 = vmatpush1.bf16.msra.mxu0 0
      %224 = vmatprep.subr.bf16.mxu0 0
      %225 = vmatpush1.bf16.msra.mxu0 0
      %226 = vmatprep.subr.bf16.mxu0 0
      %227 = vmatpush1.bf16.msra.mxu0 0
      %228 = vmatprep.subr.bf16.mxu0 0
      %229 = vmatpush1.bf16.msra.mxu0 0
      %230 = vmatprep.subr.bf16.mxu0 0
      %231 = vmatpush1.bf16.msra.mxu0 0
      %232 = vmatprep.subr.bf16.mxu0 0
      %233 = vmatpush1.bf16.msra.mxu0 0
      %234 = vmatprep.subr.bf16.mxu0 0
      %235 = vmatpush1.bf16.msra.mxu0 0
      %236 = vmatprep.subr.bf16.mxu0 0
      %237 = vmatpush1.bf16.msra.mxu0 0
      %238 = vmatprep.subr.bf16.mxu0 0
      %239 = vmatpush1.bf16.msra.mxu0 0
      %240 = vmatprep.subr.bf16.mxu0 0
      %241 = vmatpush1.bf16.msra.mxu0 0
      %242 = vmatprep.subr.bf16.mxu0 0
      %243 = vmatpush1.bf16.msra.mxu0 0
      %244 = vmatprep.subr.bf16.mxu0 0
      %245 = vmatpush1.bf16.msra.mxu0 0
      %246 = vmatprep.subr.bf16.mxu0 0
      %247 = vmatpush1.bf16.msra.mxu0 0
      %248 = vmatprep.subr.bf16.mxu0 0
      %249 = vmatpush1.bf16.msra.mxu0 0
      %250 = vmatprep.mubr.bf16.mxu0 0
      %251 = vmatmul.mubr.bf16.gmra.mrb[0].mxu0 %v216
      %v252 = vpop.f32.mrb[0].mxu0
      %v253 = vadd.f32 %v212, %v252
      %v254 = vpop.f32.mrb[0].mxu0
      %v255 = vpop.f32.mrb[0].mxu0
      %v256 = vpop.f32.mrb[0].mxu0
      %257 = vdwg.mxu0
      %v258 = vmax.f32 %v253, 0.0
      %v259 = vpack.c.bf16 %v258, %v258
      %260 = vst [vmem:[%s199] sm:$0x3] %v259
      %p261 = scmp.lt.s32.totalorder %s18, 1
      %s262 = scalar_select %p261, %s18, 1
      %p263 = scmp.lt.s32.totalorder %s19, 0
      %s264 = scalar_select %p263, %s19, 0
      %s265 = sadd.s32 %s264, %s262
      %s266 = smul.addr %s265, 2
      %s267 = scalar_lea.vmem %s3, %s266
      // Predicated region
      $region33: #{gsa_forward.2} parent=31 // pred_check
        %p268 = pneg %p116
      $region34: #{gsa_forward.2} parent=31 // pred_check_branch
        %270 = sbr.rel (%p268) target = $region36
      $region35: #{gsa_forward.2} parent=31 // pred_region
        _
      $region36: #{gsa_forward.2} parent=31 // pred_fallthru
        _
    $region32: #{gsa_forward.2} parent=5 // pred_fallthru
      _
    %p271 = scmp.le.s32.totalorder 2, %s9
    // Predicated region
    $region37: #{gsa_forward.2} parent=5 // pred_check
      %p272 = pneg %p271
    $region38: #{gsa_forward.2} parent=5 // pred_check_branch
      %274 = sbr.rel (%p272) target = $region40
    $region39: #{gsa_forward.2} parent=5 // pred_region
      %s275 = ssub.s32 %s9, 2
      // Predicated region
      $region41: #{gsa_forward.2} parent=39 // pred_check
        %p276 = pneg %p122
      $region42: #{gsa_forward.2} parent=39 // pred_check_branch
        %278 = sbr.rel (%p276) target = $region44
      $region43: #{gsa_forward.2} parent=39 // pred_region
        %p279 = scmp.lt.s32.totalorder %s20, 1
        %s280 = scalar_select %p279, %s20, 1
        %p281 = scmp.lt.s32.totalorder %s21, 0
        %s282 = scalar_select %p281, %s21, 0
        %s283 = sadd.s32 %s282, %s280
        %s284 = smul.addr %s283, 2
        %s285 = scalar_lea.vmem %s3, %s284
      $region44: #{gsa_forward.2} parent=39 // pred_fallthru
        _
    $region40: #{gsa_forward.2} parent=5 // pred_fallthru
      _
  $region6: #{gsa_forward.2} parent=0 // loop_footer
    %s13 = sadd.s32 1, %s9
  $region7: #{gsa_forward.2} parent=0 // loop_footer_branch
    %8 = sbr.rel target = $region3
  $region8: #{gsa_forward.2} parent=0 // loop_exit
    _

// kernel: gsa_forward.3
$region0: #{gsa_forward.3}
  #allocation0 [shape = 'u32[]', space=smem, size = 0x4, offset = 0x4, fixed_abs, tag = 'smem constant byte address 0x4 - core index']
  #allocation1 [shape = 'u32[144,128]{1,0:T(1,128)}', space=vmem, size = 0x12000, scoped, tag = 'internal scratch']
  %s0 = inlined_call_operand.vmem [shape: bf16[2,4,128], index: 0, kind: input, shape index: {}, may-alias: {0,1}]
  %s1 = inlined_call_operand.vmem [shape: bf16[2,4,128], index: 1, kind: input, shape index: {}, may-alias: {0,1}]
  %s2 = inlined_call_operand.vmem [shape: bf16[32,4], index: 2, kind: input, shape index: {}]
  %s3 = inlined_call_operand.vmem [shape: f32[32,1], index: 3, kind: input, shape index: {}]
  %s4 = inlined_call_operand.vmem [shape: f32[2,32,128], index: 4, kind: output, shape index: {}]
  %s5 = sld [smem:[#allocation0]]
  $region49: #{gsa_forward.3} parent=0
    _
  %s7 = ssub.s32 1, %s5
  %s8 = scalar_select 0, %s7, %s5
  loop: start=0, step=1, limit=4
  $region2: #{gsa_forward.3} parent=0 // loop_pre_header
    _
  $region3: #{gsa_forward.3} parent=0 // loop_header
    %s10 = sphi 0, %s14
    %p11 = scmp.ge.s32.totalorder %s10, 4
    %s17 = sphi 0, %s29
    %s18 = sphi 0, %s25
    %s19 = sphi 0, %s17
    %s20 = sphi 0, %s18
    %s21 = sphi 0, %s19
    %s22 = sphi 0, %s20
    %s34 = sphi 0, %s36
    %s37 = sphi 0, %s34
    %s38 = sphi 0, %s37
    %s54 = sphi 0, %s38
    %s60 = sphi 0, %s62
    %s63 = sphi 0, %s60
    %s64 = sphi 0, %s63
    %s80 = sphi 0, %s64
    %s84 = sphi 0, %s84
    %s86 = sphi 0, %s84
    %s87 = sphi 0, %s86
    %s101 = sphi 0, %s87
    %s105 = sphi 0, %s105
    %s107 = sphi 0, %s105
    %s108 = sphi 0, %s107
    %s122 = sphi 0, %s108
    %s130 = sphi 0, %s132
    %s133 = sphi 0, %s130
    %s134 = sphi 0, %s133
    %s150 = sphi 0, %s134
  $region4: #{gsa_forward.3} parent=0 // loop_header_branch
    %13 = sbr.rel (%p11) target = $region8
  $region5: #{gsa_forward.3} parent=0 // loop_body
    %s15 = ssub.s32 %s10, 1
    %s16 = ssub.s32 %s10, 2
    %s23 = sadd.s32 1, %s18
    %p24 = scmp.ge.s32.totalorder %s23, 1
    %s25 = scalar_select %p24, 0, %s23
    %s26 = sadd.s32 1, %s17
    %s27 = scalar_select %p24, %s26, %s17
    %p28 = scmp.ge.s32.totalorder %s27, 2
    %s29 = scalar_select %p28, 0, %s27
    %s30 = ssub.s32 %s17, %s29
    %s31 = ssub.s32 %s18, %s25
    %s32 = sor.u32 %s30, %s31
    %p33 = scmp.eq.s32.totalorder %s32, 0
    %s35 = sadd.s32 %s34, 1
    %s36 = scalar_select %p33, %s34, %s35
    %p39 = pneg %p33
    %p40 = scmp.eq.s32.totalorder %s10, 1
    %p41 = por %p39, %p40
    %p42 = scmp.ne.s32.totalorder %s34, %s37
    %p43 = scmp.eq.s32.totalorder %s10, 0
    %p44 = por %p42, %p43
    %p45 = scmp.ne.s32.totalorder %s34, %s37
    %p46 = scmp.eq.s32.totalorder %s15, 1
    %p47 = por %p45, %p46
    %p48 = scmp.ne.s32.totalorder %s37, %s38
    %p49 = scmp.eq.s32.totalorder %s15, 0
    %p50 = por %p48, %p49
    %p51 = scmp.ne.s32.totalorder %s37, %s38
    %p52 = scmp.eq.s32.totalorder %s16, 1
    %p53 = por %p51, %p52
    %p55 = scmp.ne.s32.totalorder %s38, %s54
    %p56 = scmp.eq.s32.totalorder %s16, 0
    %p57 = por %p55, %p56
    %s58 = ssub.s32 %s17, %s29
    %p59 = scmp.eq.s32.totalorder %s58, 0
    %s61 = sadd.s32 %s60, 1
    %s62 = scalar_select %p59, %s60, %s61
    %p65 = pneg %p59
    %p66 = scmp.eq.s32.totalorder %s10, 1
    %p67 = por %p65, %p66
    %p68 = scmp.ne.s32.totalorder %s60, %s63
    %p69 = scmp.eq.s32.totalorder %s10, 0
    %p70 = por %p68, %p69
    %p71 = scmp.ne.s32.totalorder %s60, %s63
    %p72 = scmp.eq.s32.totalorder %s15, 1
    %p73 = por %p71, %p72
    %p74 = scmp.ne.s32.totalorder %s63, %s64
    %p75 = scmp.eq.s32.totalorder %s15, 0
    %p76 = por %p74, %p75
    %p77 = scmp.ne.s32.totalorder %s63, %s64
    %p78 = scmp.eq.s32.totalorder %s16, 1
    %p79 = por %p77, %p78
    %p81 = scmp.ne.s32.totalorder %s64, %s80
    %p82 = scmp.eq.s32.totalorder %s16, 0
    %p83 = por %p81, %p82
    %s85 = sadd.s32 %s84, 1
    %p88 = scmp.eq.s32.totalorder %s10, 1
    %p89 = scmp.ne.s32.totalorder %s84, %s86
    %p90 = scmp.eq.s32.totalorder %s10, 0
    %p91 = por %p89, %p90
    %p92 = scmp.ne.s32.totalorder %s84, %s86
    %p93 = scmp.eq.s32.totalorder %s15, 1
    %p94 = por %p92, %p93
    %p95 = scmp.ne.s32.totalorder %s86, %s87
    %p96 = scmp.eq.s32.totalorder %s15, 0
    %p97 = por %p95, %p96
    %p98 = scmp.ne.s32.totalorder %s86, %s87
    %p99 = scmp.eq.s32.totalorder %s16, 1
    %p100 = por %p98, %p99
    %p102 = scmp.ne.s32.totalorder %s87, %s101
    %p103 = scmp.eq.s32.totalorder %s16, 0
    %p104 = por %p102, %p103
    %s106 = sadd.s32 %s105, 1
    %p109 = scmp.eq.s32.totalorder %s10, 1
    %p110 = scmp.ne.s32.totalorder %s105, %s107
    %p111 = scmp.eq.s32.totalorder %s10, 0
    %p112 = por %p110, %p111
    %p113 = scmp.ne.s32.totalorder %s105, %s107
    %p114 = scmp.eq.s32.totalorder %s15, 1
    %p115 = por %p113, %p114
    %p116 = scmp.ne.s32.totalorder %s107, %s108
    %p117 = scmp.eq.s32.totalorder %s15, 0
    %p118 = por %p116, %p117
    %p119 = scmp.ne.s32.totalorder %s107, %s108
    %p120 = scmp.eq.s32.totalorder %s16, 1
    %p121 = por %p119, %p120
    %p123 = scmp.ne.s32.totalorder %s108, %s122
    %p124 = scmp.eq.s32.totalorder %s16, 0
    %p125 = por %p123, %p124
    %s126 = ssub.s32 %s17, %s29
    %s127 = ssub.s32 %s18, %s25
    %s128 = sor.u32 %s126, %s127
    %p129 = scmp.eq.s32.totalorder %s128, 0
    %s131 = sadd.s32 %s130, 1
    %s132 = scalar_select %p129, %s130, %s131
    %p135 = pneg %p129
    %p136 = scmp.eq.s32.totalorder %s10, 1
    %p137 = por %p135, %p136
    %p138 = scmp.ne.s32.totalorder %s130, %s133
    %p139 = scmp.eq.s32.totalorder %s10, 0
    %p140 = por %p138, %p139
    %p141 = scmp.ne.s32.totalorder %s130, %s133
    %p142 = scmp.eq.s32.totalorder %s15, 1
    %p143 = por %p141, %p142
    %p144 = scmp.ne.s32.totalorder %s133, %s134
    %p145 = scmp.eq.s32.totalorder %s15, 0
    %p146 = por %p144, %p145
    %p147 = scmp.ne.s32.totalorder %s133, %s134
    %p148 = scmp.eq.s32.totalorder %s16, 1
    %p149 = por %p147, %p148
    %p151 = scmp.ne.s32.totalorder %s134, %s150
    %p152 = scmp.eq.s32.totalorder %s16, 0
    %p153 = por %p151, %p152
    %p154 = scmp.le.s32.totalorder 1, %s10
    %p155 = scmp.lt.s32.totalorder %s10, 3
    %p156 = pnand %p154, %p155
    %p157 = pneg %p156
    // Predicated region
    $region9: #{gsa_forward.3} parent=5 // pred_check
      _
    $region10: #{gsa_forward.3} parent=5 // pred_check_branch
      %159 = sbr.rel (%p156) target = $region12
    $region11: #{gsa_forward.3} parent=5 // pred_region
      %s160 = ssub.s32 %s10, 1
      // Predicated region
      $region13: #{gsa_forward.3} parent=11 // pred_check
        %p161 = pneg %p97
      $region14: #{gsa_forward.3} parent=11 // pred_check_branch
        %163 = sbr.rel (%p161) target = $region16
      $region15: #{gsa_forward.3} parent=11 // pred_region
        _
      $region16: #{gsa_forward.3} parent=11 // pred_fallthru
        _
      // Predicated region
      $region17: #{gsa_forward.3} parent=11 // pred_check
        %p164 = pneg %p118
      $region18: #{gsa_forward.3} parent=11 // pred_check_branch
        %166 = sbr.rel (%p164) target = $region20
      $region19: #{gsa_forward.3} parent=11 // pred_region
        _
      $region20: #{gsa_forward.3} parent=11 // pred_fallthru
        _
    $region12: #{gsa_forward.3} parent=5 // pred_fallthru
      _
    %p167 = scmp.lt.s32.totalorder %s10, 2
    // Predicated region
    $region21: #{gsa_forward.3} parent=5 // pred_check
      %p168 = pneg %p167
    $region22: #{gsa_forward.3} parent=5 // pred_check_branch
      %170 = sbr.rel (%p168) target = $region24
    $region23: #{gsa_forward.3} parent=5 // pred_region
      // Predicated region
      $region25: #{gsa_forward.3} parent=23 // pred_check
        %p171 = pneg %p44
      $region26: #{gsa_forward.3} parent=23 // pred_check_branch
        %173 = sbr.rel (%p171) target = $region28
      $region27: #{gsa_forward.3} parent=23 // pred_region
        %p174 = scmp.lt.s32.totalorder %s17, 1
        %s175 = scalar_select %p174, %s17, 1
        %p176 = scmp.lt.s32.totalorder %s18, 0
        %s177 = scalar_select %p176, %s18, 0
        %s178 = sadd.s32 %s177, %s175
        %s179 = smul.addr %s178, 2
        %s180 = scalar_lea.vmem %s0, %s179
      $region28: #{gsa_forward.3} parent=23 // pred_fallthru
        _
      // Predicated region
      $region29: #{gsa_forward.3} parent=23 // pred_check
        %p181 = pneg %p70
      $region30: #{gsa_forward.3} parent=23 // pred_check_branch
        %183 = sbr.rel (%p181) target = $region32
      $region31: #{gsa_forward.3} parent=23 // pred_region
        %p184 = scmp.lt.s32.totalorder %s17, 1
        %s185 = scalar_select %p184, %s17, 1
        %s186 = smul.addr %s185, 2
        %s187 = scalar_lea.vmem %s1, %s186
      $region32: #{gsa_forward.3} parent=23 // pred_fallthru
        _
    $region24: #{gsa_forward.3} parent=5 // pred_fallthru
      _
    %p188 = scmp.le.s32.totalorder 1, %s10
    %p189 = scmp.lt.s32.totalorder %s10, 3
    %p190 = pnand %p188, %p189
    %p191 = pneg %p190
    // Predicated region
    $region33: #{gsa_forward.3} parent=5 // pred_check
      _
    $region34: #{gsa_forward.3} parent=5 // pred_check_branch
      %193 = sbr.rel (%p190) target = $region36
    $region35: #{gsa_forward.3} parent=5 // pred_region
      %s194 = ssub.s32 %s10, 1
      %p195 = scmp.lt.s32.totalorder %s19, 1
      %s196 = scalar_select %p195, %s19, 1
      %p197 = scmp.lt.s32.totalorder %s20, 0
      %s198 = scalar_select %p197, %s20, 0
      %s199 = sadd.s32 %s198, %s196
      %s200 = smul.addr %s199, 2
      %s201 = scalar_lea.vmem %s0, %s200
      %p202 = pneg %p50
      %p203 = pneg %p47
      %p204 = scmp.lt.s32.totalorder %s19, 1
      %s205 = scalar_select %p204, %s19, 1
      %s206 = smul.addr %s205, 2
      %s207 = scalar_lea.vmem %s1, %s206
      %p208 = pneg %p76
      %p209 = pneg %p73
      %p210 = pneg %p97
      %p211 = pneg %p94
      %p212 = pneg %p118
      %p213 = pneg %p115
      %p214 = pneg %p146
      %p215 = pneg %p143
      %p216 = scmp.lt.s32.totalorder %s19, 1
      %s217 = scalar_select %p216, %s19, 1
      %p218 = scmp.lt.s32.totalorder %s20, 0
      %s219 = scalar_select %p218, %s20, 0
      %s220 = smul.addr %s217, 4
      %s221 = sadd.s32 %s219, %s220
      %s222 = smul.addr %s221, 8
      %s223 = scalar_lea.vmem %s4, %s222
      %p224 = scmp.lt.s32.totalorder %s19, 1
      %s225 = scalar_select %p224, %s19, 1
      %p226 = scmp.lt.s32.totalorder %s20, 0
      %s227 = scalar_select %p226, %s20, 0
      %s228 = sadd.s32 %s227, %s225
      %s229 = smul.addr %s228, 2
      %s230 = scalar_lea.vmem %s0, %s229
      %p231 = scmp.lt.s32.totalorder %s19, 1
      %s232 = scalar_select %p231, %s19, 1
      %s233 = smul.addr %s232, 2
      %s234 = scalar_lea.vmem %s1, %s233
      %p235 = scmp.lt.s32.totalorder %s19, 1
      %s236 = scalar_select %p235, %s19, 1
      %p237 = scmp.lt.s32.totalorder %s20, 0
      %s238 = scalar_select %p237, %s20, 0
      %s239 = smul.addr %s236, 4
      %s240 = sadd.s32 %s238, %s239
      %s241 = smul.addr %s240, 8
      %s242 = scalar_lea.vmem %s4, %s241
      %v244 = vld [vmem:[%s230] sm:$0x3]
      %v245 = vld [vmem:[%s234] sm:$0x3]
      %246 = vxpose.xlu0.c.b16.start [1/8] %v244, 128
      %247 = vxpose.xlu0.c.b16.cont [2/8] 0, 128
      %248 = vxpose.xlu0.c.b16.cont [3/8] 0, 128
      %249 = vxpose.xlu0.c.b16.cont [4/8] 0, 128
      %250 = vxpose.xlu0.c.b16.cont [5/8] 0, 128
      %251 = vxpose.xlu0.c.b16.cont [6/8] 0, 128
      %252 = vxpose.xlu0.c.b16.cont [7/8] 0, 128
      %253 = vxpose.xlu0.c.b16.end [8/8] 0, 128
      %v254 = vpop.trf.xlu0
      %v255 = vpop.trf.xlu0
      %v256 = vpop.trf.xlu0
      %v257 = vpop.trf.xlu0
      %v258 = vpop.trf.xlu0
      %v259 = vpop.trf.xlu0
      %v260 = vpop.trf.xlu0
      %v261 = vpop.trf.xlu0
      %vm262 = vcmask 31744
      %v264 = vsel %vm262, %v254, 0
      %v267 = vsel %vm262, %v255, 0
      %v270 = vsel %vm262, %v256, 0
      %v273 = vsel %vm262, %v257, 0
      %v276 = vsel %vm262, %v258, 0
      %v279 = vsel %vm262, %v259, 0
      %v282 = vsel %vm262, %v260, 0
      %v285 = vsel %vm262, %v261, 0
      %vm287 = vcmask 1041408
      %v289 = vsel %vm287, %v245, 0
      %291 = vmatprep.subr.bf16.mxu0 0
      %292 = vmatpush1.bf16.msra.mxu0 %v289
      %293 = vmatprep.subr.bf16.mxu0 0
      %294 = vmatpush1.bf16.msra.mxu0 0
      %295 = vmatprep.subr.bf16.mxu0 0
      %296 = vmatpush1.bf16.msra.mxu0 0
      %297 = vmatprep.subr.bf16.mxu0 0
      %298 = vmatpush1.bf16.msra.mxu0 0
      %299 = vmatprep.subr.bf16.mxu0 0
      %300 = vmatpush1.bf16.msra.mxu0 0
      %301 = vmatprep.subr.bf16.mxu0 0
      %302 = vmatpush1.bf16.msra.mxu0 0
      %303 = vmatprep.subr.bf16.mxu0 0
      %304 = vmatpush1.bf16.msra.mxu0 0
      %305 = vmatprep.subr.bf16.mxu0 0
      %306 = vmatpush1.bf16.msra.mxu0 0
      %307 = vmatprep.subr.bf16.mxu0 0
      %308 = vmatpush1.bf16.msra.mxu0 0
      %309 = vmatprep.subr.bf16.mxu0 0
      %310 = vmatpush1.bf16.msra.mxu0 0
      %311 = vmatprep.subr.bf16.mxu0 0
      %312 = vmatpush1.bf16.msra.mxu0 0
      %313 = vmatprep.subr.bf16.mxu0 0
      %314 = vmatpush1.bf16.msra.mxu0 0
      %315 = vmatprep.subr.bf16.mxu0 0
      %316 = vmatpush1.bf16.msra.mxu0 0
      %317 = vmatprep.subr.bf16.mxu0 0
      %318 = vmatpush1.bf16.msra.mxu0 0
      %319 = vmatprep.subr.bf16.mxu0 0
      %320 = vmatpush1.bf16.msra.mxu0 0
      %321 = vmatprep.subr.bf16.mxu0 0
      %322 = vmatpush1.bf16.msra.mxu0 0
      %323 = vmatprep.mubr.bf16.mxu0 0
      %324 = vmatmul.mubr.bf16.gmra.mrb[0].mxu0 %v264
      %v325 = vpop.f32.mrb[0].mxu0
      %v326 = vadd.f32 0.0, %v325
      %v327 = vpop.f32.mrb[0].mxu0
      %v328 = vpop.f32.mrb[0].mxu0
      %v329 = vadd.f32 0.0, %v328
      %v330 = vpop.f32.mrb[0].mxu0
      %331 = vmatprep.mubr.bf16.mxu0 0
      %332 = vmatmul.mubr.bf16.gmra.mrb[0].mxu0 %v267
      %v333 = vpop.f32.mrb[0].mxu0
      %v334 = vadd.f32 0.0, %v333
      %v335 = vpop.f32.mrb[0].mxu0
      %v336 = vpop.f32.mrb[0].mxu0
      %v337 = vadd.f32 0.0, %v336
      %v338 = vpop.f32.mrb[0].mxu0
      %339 = vmatprep.mubr.bf16.mxu0 0
      %340 = vmatmul.mubr.bf16.gmra.mrb[0].mxu0 %v270
      %v341 = vpop.f32.mrb[0].mxu0
      %v342 = vadd.f32 0.0, %v341
      %v343 = vpop.f32.mrb[0].mxu0
      %v344 = vpop.f32.mrb[0].mxu0
      %v345 = vadd.f32 0.0, %v344
      %v346 = vpop.f32.mrb[0].mxu0
      %347 = vmatprep.mubr.bf16.mxu0 0
      %348 = vmatmul.mubr.bf16.gmra.mrb[0].mxu0 %v273
      %v349 = vpop.f32.mrb[0].mxu0
      %v350 = vadd.f32 0.0, %v349
      %v351 = vpop.f32.mrb[0].mxu0
      %v352 = vpop.f32.mrb[0].mxu0
      %v353 = vadd.f32 0.0, %v352
      %v354 = vpop.f32.mrb[0].mxu0
      %355 = vmatprep.mubr.bf16.mxu0 0
      %356 = vmatmul.mubr.bf16.gmra.mrb[0].mxu0 %v276
      %v357 = vpop.f32.mrb[0].mxu0
      %v358 = vadd.f32 0.0, %v357
      %v359 = vpop.f32.mrb[0].mxu0
      %v360 = vpop.f32.mrb[0].mxu0
      %v361 = vadd.f32 0.0, %v360
      %v362 = vpop.f32.mrb[0].mxu0
      %363 = vmatprep.mubr.bf16.mxu0 0
      %364 = vmatmul.mubr.bf16.gmra.mrb[0].mxu0 %v279
      %v365 = vpop.f32.mrb[0].mxu0
      %v366 = vadd.f32 0.0, %v365
      %v367 = vpop.f32.mrb[0].mxu0
      %v368 = vpop.f32.mrb[0].mxu0
      %v369 = vadd.f32 0.0, %v368
      %v370 = vpop.f32.mrb[0].mxu0
      %371 = vmatprep.mubr.bf16.mxu0 0
      %372 = vmatmul.mubr.bf16.gmra.mrb[0].mxu0 %v282
      %v373 = vpop.f32.mrb[0].mxu0
      %v374 = vadd.f32 0.0, %v373
      %v375 = vpop.f32.mrb[0].mxu0
      %v376 = vpop.f32.mrb[0].mxu0
      %v377 = vadd.f32 0.0, %v376
      %v378 = vpop.f32.mrb[0].mxu0
      %379 = vmatprep.mubr.bf16.mxu0 0
      %380 = vmatmul.mubr.bf16.gmra.mrb[0].mxu0 %v285
      %v381 = vpop.f32.mrb[0].mxu0
      %v382 = vadd.f32 0.0, %v381
      %v383 = vpop.f32.mrb[0].mxu0
      %v384 = vpop.f32.mrb[0].mxu0
      %v385 = vadd.f32 0.0, %v384
      %v386 = vpop.f32.mrb[0].mxu0
      %387 = vdwg.mxu0
      %v388 = vlaneseq
      %v389 = vand.u32 %v388, 127
      %vm390 = vcmp.lt.s32.totalorder %v389, 64
      %v391 = vsel %vm390, %v326, -1e+30
      %v392 = vsel %vm390, %v329, -1e+30
      %v393 = vsel %vm390, %v334, -1e+30
      %v394 = vsel %vm390, %v337, -1e+30
      %v395 = vsel %vm390, %v342, -1e+30
      %v396 = vsel %vm390, %v345, -1e+30
      %v397 = vsel %vm390, %v350, -1e+30
      %v398 = vsel %vm390, %v353, -1e+30
      %v399 = vsel %vm390, %v358, -1e+30
      %v400 = vsel %vm390, %v361, -1e+30
      %v401 = vsel %vm390, %v366, -1e+30
      %v402 = vsel %vm390, %v369, -1e+30
      %v403 = vsel %vm390, %v374, -1e+30
      %v404 = vsel %vm390, %v377, -1e+30
      %v405 = vsel %vm390, %v382, -1e+30
      %v406 = vsel %vm390, %v385, -1e+30
      %407 = vmax.xlane.f32.xlu0 %v391
      %v408 = vpop.xlane.xlu0 %407
      %409 = vmax.xlane.f32.xlu0 %v392
      %v410 = vpop.xlane.xlu0 %409
      %411 = vmax.xlane.f32.xlu0 %v393
      %v412 = vpop.xlane.xlu0 %411
      %413 = vmax.xlane.f32.xlu0 %v394
      %v414 = vpop.xlane.xlu0 %413
      %415 = vmax.xlane.f32.xlu0 %v395
      %v416 = vpop.xlane.xlu0 %415
      %417 = vmax.xlane.f32.xlu0 %v396
      %v418 = vpop.xlane.xlu0 %417
      %419 = vmax.xlane.f32.xlu0 %v397
      %v420 = vpop.xlane.xlu0 %419
      %421 = vmax.xlane.f32.xlu0 %v398
      %v422 = vpop.xlane.xlu0 %421
      %423 = vmax.xlane.f32.xlu0 %v399
      %v424 = vpop.xlane.xlu0 %423
      %425 = vmax.xlane.f32.xlu0 %v400
      %v426 = vpop.xlane.xlu0 %425
      %427 = vmax.xlane.f32.xlu0 %v401
      %v428 = vpop.xlane.xlu0 %427
      %429 = vmax.xlane.f32.xlu0 %v402
      %v430 = vpop.xlane.xlu0 %429
      %431 = vmax.xlane.f32.xlu0 %v403
      %v432 = vpop.xlane.xlu0 %431
      %433 = vmax.xlane.f32.xlu0 %v404
      %v434 = vpop.xlane.xlu0 %433
      %435 = vmax.xlane.f32.xlu0 %v405
      %v436 = vpop.xlane.xlu0 %435
      %437 = vmax.xlane.f32.xlu0 %v406
      %v438 = vpop.xlane.xlu0 %437
      %v439 = vsub.f32 %v391, %v408
      %v440 = vsub.f32 %v392, %v410
      %v441 = vsub.f32 %v393, %v412
      %v442 = vsub.f32 %v394, %v414
      %v443 = vsub.f32 %v395, %v416
      %v444 = vsub.f32 %v396, %v418
      %v445 = vsub.f32 %v397, %v420
      %v446 = vsub.f32 %v398, %v422
      %v447 = vsub.f32 %v399, %v424
      %v448 = vsub.f32 %v400, %v426
      %v449 = vsub.f32 %v401, %v428
      %v450 = vsub.f32 %v402, %v430
      %v451 = vsub.f32 %v403, %v432
      %v452 = vsub.f32 %v404, %v434
      %v453 = vsub.f32 %v405, %v436
      %v454 = vsub.f32 %v406, %v438
      %v455 = vmul.f32 %v439, 1.442695
      %v456 = vpow.pop %v455
      %v457 = vmul.f32 %v440, 1.442695
      %v458 = vpow.pop %v457
      %v459 = vmul.f32 %v441, 1.442695
      %v460 = vpow.pop %v459
      %v461 = vmul.f32 %v442, 1.442695
      %v462 = vpow.pop %v461
      %v463 = vmul.f32 %v443, 1.442695
      %v464 = vpow.pop %v463
      %v465 = vmul.f32 %v444, 1.442695
      %v466 = vpow.pop %v465
      %v467 = vmul.f32 %v445, 1.442695
      %v468 = vpow.pop %v467
      %v469 = vmul.f32 %v446, 1.442695
      %v470 = vpow.pop %v469
      %v471 = vmul.f32 %v447, 1.442695
      %v472 = vpow.pop %v471
      %v473 = vmul.f32 %v448, 1.442695
      %v474 = vpow.pop %v473
      %v475 = vmul.f32 %v449, 1.442695
      %v476 = vpow.pop %v475
      %v477 = vmul.f32 %v450, 1.442695
      %v478 = vpow.pop %v477
      %v479 = vmul.f32 %v451, 1.442695
      %v480 = vpow.pop %v479
      %v481 = vmul.f32 %v452, 1.442695
      %v482 = vpow.pop %v481
      %v483 = vmul.f32 %v453, 1.442695
      %v484 = vpow.pop %v483
      %v485 = vmul.f32 %v454, 1.442695
      %v486 = vpow.pop %v485
      %v487 = vpack.c.bf16 %v458, %v456
      %v488 = vpack.c.bf16 %v462, %v460
      %v489 = vpack.c.bf16 %v466, %v464
      %v490 = vpack.c.bf16 %v470, %v468
      %v491 = vpack.c.bf16 %v474, %v472
      %v492 = vpack.c.bf16 %v478, %v476
      %v493 = vpack.c.bf16 %v482, %v480
      %v494 = vpack.c.bf16 %v486, %v484
      %495 = vadd.xlane.f32.xlu0 %v456
      %v496 = vpop.xlane.xlu0 %495
      %497 = vadd.xlane.f32.xlu0 %v458
      %v498 = vpop.xlane.xlu0 %497
      %499 = vadd.xlane.f32.xlu0 %v460
      %v500 = vpop.xlane.xlu0 %499
      %501 = vadd.xlane.f32.xlu0 %v462
      %v502 = vpop.xlane.xlu0 %501
      %503 = vadd.xlane.f32.xlu0 %v464
      %v504 = vpop.xlane.xlu0 %503
      %505 = vadd.xlane.f32.xlu0 %v466
      %v506 = vpop.xlane.xlu0 %505
      %507 = vadd.xlane.f32.xlu0 %v468
      %v508 = vpop.xlane.xlu0 %507
      %509 = vadd.xlane.f32.xlu0 %v470
      %v510 = vpop.xlane.xlu0 %509
      %511 = vadd.xlane.f32.xlu0 %v472
      %v512 = vpop.xlane.xlu0 %511
      %513 = vadd.xlane.f32.xlu0 %v474
      %v514 = vpop.xlane.xlu0 %513
      %515 = vadd.xlane.f32.xlu0 %v476
      %v516 = vpop.xlane.xlu0 %515
      %517 = vadd.xlane.f32.xlu0 %v478
      %v518 = vpop.xlane.xlu0 %517
      %519 = vadd.xlane.f32.xlu0 %v480
      %v520 = vpop.xlane.xlu0 %519
      %521 = vadd.xlane.f32.xlu0 %v482
      %v522 = vpop.xlane.xlu0 %521
      %523 = vadd.xlane.f32.xlu0 %v484
      %v524 = vpop.xlane.xlu0 %523
      %525 = vadd.xlane.f32.xlu0 %v486
      %v526 = vpop.xlane.xlu0 %525
      %527 = vmatprep.subr.bf16.mxu0 0
      %528 = vmatpush1.bf16.xpose.msra.mxu0 %v245
      %529 = vmatprep.subr.bf16.mxu0 0
      %530 = vmatpush1.bf16.xpose.msra.mxu0 0
      %531 = vmatprep.subr.bf16.mxu0 0
      %532 = vmatpush1.bf16.xpose.msra.mxu0 0
      %533 = vmatprep.subr.bf16.mxu0 0
      %534 = vmatpush1.bf16.xpose.msra.mxu0 0
      %535 = vmatprep.subr.bf16.mxu0 0
      %536 = vmatpush1.bf16.xpose.msra.mxu0 0
      %537 = vmatprep.subr.bf16.mxu0 0
      %538 = vmatpush1.bf16.xpose.msra.mxu0 0
      %539 = vmatprep.subr.bf16.mxu0 0
      %540 = vmatpush1.bf16.xpose.msra.mxu0 0
      %541 = vmatprep.subr.bf16.mxu0 0
      %542 = vmatpush1.bf16.xpose.msra.mxu0 0
      %543 = vmatprep.subr.bf16.mxu0 0
      %544 = vmatpush1.bf16.xpose.msra.mxu0 0
      %545 = vmatprep.subr.bf16.mxu0 0
      %546 = vmatpush1.bf16.xpose.msra.mxu0 0
      %547 = vmatprep.subr.bf16.mxu0 0
      %548 = vmatpush1.bf16.xpose.msra.mxu0 0
      %549 = vmatprep.subr.bf16.mxu0 0
      %550 = vmatpush1.bf16.xpose.msra.mxu0 0
      %551 = vmatprep.subr.bf16.mxu0 0
      %552 = vmatpush1.bf16.xpose.msra.mxu0 0
      %553 = vmatprep.subr.bf16.mxu0 0
      %554 = vmatpush1.bf16.xpose.msra.mxu0 0
      %555 = vmatprep.subr.bf16.mxu0 0
      %556 = vmatpush1.bf16.xpose.msra.mxu0 0
      %557 = vmatprep.subr.bf16.mxu0 0
      %558 = vmatpush1.bf16.xpose.msra.mxu0 0
      %559 = vmatprep.mubr.bf16.mxu0 0
      %560 = vmatmul.mubr.bf16.gmra.mrb[0].mxu0 %v487
      %v561 = vpop.f32.mrb[0].mxu0
      %v562 = vadd.f32 0.0, %v561
      %v563 = vpop.f32.mrb[0].mxu0
      %v564 = vpop.f32.mrb[0].mxu0
      %v565 = vadd.f32 0.0, %v564
      %v566 = vpop.f32.mrb[0].mxu0
      %567 = vmatprep.mubr.bf16.mxu0 0
      %568 = vmatmul.mubr.bf16.gmra.mrb[0].mxu0 %v488
      %v569 = vpop.f32.mrb[0].mxu0
      %v570 = vadd.f32 0.0, %v569
      %v571 = vpop.f32.mrb[0].mxu0
      %v572 = vpop.f32.mrb[0].mxu0
      %v573 = vadd.f32 0.0, %v572
      %v574 = vpop.f32.mrb[0].mxu0
      %575 = vmatprep.mubr.bf16.mxu0 0
      %576 = vmatmul.mubr.bf16.gmra.mrb[0].mxu0 %v489
      %v577 = vpop.f32.mrb[0].mxu0
      %v578 = vadd.f32 0.0, %v577
      %v579 = vpop.f32.mrb[0].mxu0
      %v580 = vpop.f32.mrb[0].mxu0
      %v581 = vadd.f32 0.0, %v580
      %v582 = vpop.f32.mrb[0].mxu0
      %583 = vmatprep.mubr.bf16.mxu0 0
      %584 = vmatmul.mubr.bf16.gmra.mrb[0].mxu0 %v490
      %v585 = vpop.f32.mrb[0].mxu0
      %v586 = vadd.f32 0.0, %v585
      %v587 = vpop.f32.mrb[0].mxu0
      %v588 = vpop.f32.mrb[0].mxu0
      %v589 = vadd.f32 0.0, %v588
      %v590 = vpop.f32.mrb[0].mxu0
      %591 = vmatprep.mubr.bf16.mxu0 0
      %592 = vmatmul.mubr.bf16.gmra.mrb[0].mxu0 %v491
      %v593 = vpop.f32.mrb[0].mxu0
      %v594 = vadd.f32 0.0, %v593
      %v595 = vpop.f32.mrb[0].mxu0
      %v596 = vpop.f32.mrb[0].mxu0
      %v597 = vadd.f32 0.0, %v596
      %v598 = vpop.f32.mrb[0].mxu0
      %599 = vmatprep.mubr.bf16.mxu0 0
      %600 = vmatmul.mubr.bf16.gmra.mrb[0].mxu0 %v492
      %v601 = vpop.f32.mrb[0].mxu0
      %v602 = vadd.f32 0.0, %v601
      %v603 = vpop.f32.mrb[0].mxu0
      %v604 = vpop.f32.mrb[0].mxu0
      %v605 = vadd.f32 0.0, %v604
      %v606 = vpop.f32.mrb[0].mxu0
      %607 = vmatprep.mubr.bf16.mxu0 0
      %608 = vmatmul.mubr.bf16.gmra.mrb[0].mxu0 %v493
      %v609 = vpop.f32.mrb[0].mxu0
      %v610 = vadd.f32 0.0, %v609
      %v611 = vpop.f32.mrb[0].mxu0
      %v612 = vpop.f32.mrb[0].mxu0
      %v613 = vadd.f32 0.0, %v612
      %v614 = vpop.f32.mrb[0].mxu0
      %615 = vmatprep.mubr.bf16.mxu0 0
      %616 = vmatmul.mubr.bf16.gmra.mrb[0].mxu0 %v494
      %v617 = vpop.f32.mrb[0].mxu0
      %v618 = vadd.f32 0.0, %v617
      %v619 = vpop.f32.mrb[0].mxu0
      %v620 = vpop.f32.mrb[0].mxu0
      %v621 = vadd.f32 0.0, %v620
      %v622 = vpop.f32.mrb[0].mxu0
      %623 = vdwg.mxu0
      %v624 = vrcp.pop %v496
      %v625 = vrcp.pop %v498
      %v626 = vrcp.pop %v500
      %v627 = vrcp.pop %v502
      %v628 = vrcp.pop %v504
      %v629 = vrcp.pop %v506
      %v630 = vrcp.pop %v508
      %v631 = vrcp.pop %v510
      %v632 = vrcp.pop %v512
      %v633 = vrcp.pop %v514
      %v634 = vrcp.pop %v516
      %v635 = vrcp.pop %v518
      %v636 = vrcp.pop %v520
      %v637 = vrcp.pop %v522
      %v638 = vrcp.pop %v524
      %v639 = vrcp.pop %v526
      %v640 = vmul.f32 %v562, %v624
      %v641 = vmul.f32 %v565, %v625
      %v642 = vmul.f32 %v570, %v626
      %v643 = vmul.f32 %v573, %v627
      %v644 = vmul.f32 %v578, %v628
      %v645 = vmul.f32 %v581, %v629
      %v646 = vmul.f32 %v586, %v630
      %v647 = vmul.f32 %v589, %v631
      %v648 = vmul.f32 %v594, %v632
      %v649 = vmul.f32 %v597, %v633
      %v650 = vmul.f32 %v602, %v634
      %v651 = vmul.f32 %v605, %v635
      %v652 = vmul.f32 %v610, %v636
      %v653 = vmul.f32 %v613, %v637
      %v654 = vmul.f32 %v618, %v638
      %v655 = vmul.f32 %v621, %v639
      %v656 = vld [vmem:[%s2] sm:$0xf]
      %v657 = vld [vmem:[%s2 + $0x4] sm:$0xf]
      %v658 = vld [vmem:[%s2 + $0x8] sm:$0xf]
      %v659 = vld [vmem:[%s2 + $0xc] sm:$0xf]
      %v660 = vpack.c.bf16 %v641, %v640
      %v661 = vpack.c.bf16 %v643, %v642
      %v662 = vpack.c.bf16 %v645, %v644
      %v663 = vpack.c.bf16 %v647, %v646
      %v664 = vpack.c.bf16 %v649, %v648
      %v665 = vpack.c.bf16 %v651, %v650
      %v666 = vpack.c.bf16 %v653, %v652
      %v667 = vpack.c.bf16 %v655, %v654
      %v668 = vld [vmem:[%s3] sm:$0xff]
      %v669 = vld [vmem:[%s3 + $0x8] sm:$0xff]
      %v670 = vld [vmem:[%s3 + $0x10] sm:$0xff]
      %v671 = vld [vmem:[%s3 + $0x18] sm:$0xff]
      %673 = vset.pattern.permute.xlu0 0
      %674 = vperm.xlu0 %673, %v668
      %v675 = vpop.permute.xlu0 %674
      %678 = vset.pattern.permute.xlu0 0
      %679 = vperm.xlu0 %678, %v669
      %v680 = vpop.permute.xlu0 %679
      %683 = vset.pattern.permute.xlu0 0
      %684 = vperm.xlu0 %683, %v670
      %v685 = vpop.permute.xlu0 %684
      %688 = vset.pattern.permute.xlu0 0
      %689 = vperm.xlu0 %688, %v671
      %v690 = vpop.permute.xlu0 %689
      %v696 = vunpack.c.l.b16 %v656
      %v697 = vunpack.c.l.b16 %v657
      %v698 = vunpack.c.l.b16 %v658
      %v699 = vunpack.c.l.b16 %v659
      %v700 = vpack.c.b16 %v697, %v696
      %v701 = vpack.c.b16 %v699, %v698
      %v703 = vsel %vm262, %v700, 0
      %v706 = vsel %vm262, %v701, 0
      %v709 = vsel %vm262, %v660, 0
      %v712 = vsel %vm262, %v661, 0
      %v715 = vsel %vm262, %v662, 0
      %v718 = vsel %vm262, %v663, 0
      %v721 = vsel %vm262, %v664, 0
      %v724 = vsel %vm262, %v665, 0
      %v727 = vsel %vm262, %v666, 0
      %v730 = vsel %vm262, %v667, 0
      %732 = vmatprep.subr.bf16.mxu0 0
      %733 = vmatpush1.bf16.xpose.msra.mxu0 %v709
      %734 = vmatprep.subr.bf16.mxu0 0
      %735 = vmatpush1.bf16.xpose.msra.mxu0 %v712
      %736 = vmatprep.subr.bf16.mxu0 0
      %737 = vmatpush1.bf16.xpose.msra.mxu0 %v715
      %738 = vmatprep.subr.bf16.mxu0 0
      %739 = vmatpush1.bf16.xpose.msra.mxu0 %v718
      %740 = vmatprep.subr.bf16.mxu0 0
      %741 = vmatpush1.bf16.xpose.msra.mxu0 %v721
      %742 = vmatprep.subr.bf16.mxu0 0
      %743 = vmatpush1.bf16.xpose.msra.mxu0 %v724
      %744 = vmatprep.subr.bf16.mxu0 0
      %745 = vmatpush1.bf16.xpose.msra.mxu0 %v727
      %746 = vmatprep.subr.bf16.mxu0 0
      %747 = vmatpush1.bf16.xpose.msra.mxu0 %v730
      %748 = vmatprep.subr.bf16.mxu0 0
      %749 = vmatpush1.bf16.xpose.msra.mxu0 0
      %750 = vmatprep.subr.bf16.mxu0 0
      %751 = vmatpush1.bf16.xpose.msra.mxu0 0
      %752 = vmatprep.subr.bf16.mxu0 0
      %753 = vmatpush1.bf16.xpose.msra.mxu0 0
      %754 = vmatprep.subr.bf16.mxu0 0
      %755 = vmatpush1.bf16.xpose.msra.mxu0 0
      %756 = vmatprep.subr.bf16.mxu0 0
      %757 = vmatpush1.bf16.xpose.msra.mxu0 0
      %758 = vmatprep.subr.bf16.mxu0 0
      %759 = vmatpush1.bf16.xpose.msra.mxu0 0
      %760 = vmatprep.subr.bf16.mxu0 0
      %761 = vmatpush1.bf16.xpose.msra.mxu0 0
      %762 = vmatprep.subr.bf16.mxu0 0
      %763 = vmatpush1.bf16.xpose.msra.mxu0 0
      %764 = vmatprep.mubr.bf16.mxu0 0
      %765 = vmatmul.mubr.bf16.gmra.mrb[0].mxu0 %v703
      %v766 = vpop.f32.mrb[0].mxu0
      %v767 = vadd.f32 %v675, %v766
      %v768 = vpop.f32.mrb[0].mxu0
      %v769 = vpop.f32.mrb[0].mxu0
      %v770 = vadd.f32 %v680, %v769
      %v771 = vpop.f32.mrb[0].mxu0
      %772 = vmatprep.mubr.bf16.mxu0 0
      %773 = vmatmul.mubr.bf16.gmra.mrb[0].mxu0 %v706
      %v774 = vpop.f32.mrb[0].mxu0
      %v775 = vadd.f32 %v685, %v774
      %v776 = vpop.f32.mrb[0].mxu0
      %v777 = vpop.f32.mrb[0].mxu0
      %v778 = vadd.f32 %v690, %v777
      %v779 = vpop.f32.mrb[0].mxu0
      %780 = vdwg.mxu0
      %v781 = vmax.f32 %v767, 0.0
      %v782 = vmax.f32 %v770, 0.0
      %v783 = vmax.f32 %v775, 0.0
      %v784 = vmax.f32 %v778, 0.0
      %785 = vst [vmem:[%s242] sm:$0xff] %v781
      %786 = vst [vmem:[%s242 + $0x8] sm:$0xff] %v782
      %787 = vst [vmem:[%s242 + $0x10] sm:$0xff] %v783
      %788 = vst [vmem:[%s242 + $0x18] sm:$0xff] %v784
      %p789 = scmp.lt.s32.totalorder %s19, 1
      %s790 = scalar_select %p789, %s19, 1
      %p791 = scmp.lt.s32.totalorder %s20, 0
      %s792 = scalar_select %p791, %s20, 0
      %s793 = smul.addr %s790, 4
      %s794 = sadd.s32 %s792, %s793
      %s795 = smul.addr %s794, 8
      %s796 = scalar_lea.vmem %s4, %s795
      // Predicated region
      $region37: #{gsa_forward.3} parent=35 // pred_check
        %p797 = pneg %p143
      $region38: #{gsa_forward.3} parent=35 // pred_check_branch
        %799 = sbr.rel (%p797) target = $region40
      $region39: #{gsa_forward.3} parent=35 // pred_region
        _
      $region40: #{gsa_forward.3} parent=35 // pred_fallthru
        _
    $region36: #{gsa_forward.3} parent=5 // pred_fallthru
      _
    %p800 = scmp.le.s32.totalorder 2, %s10
    // Predicated region
    $region41: #{gsa_forward.3} parent=5 // pred_check
      %p801 = pneg %p800
    $region42: #{gsa_forward.3} parent=5 // pred_check_branch
      %803 = sbr.rel (%p801) target = $region44
    $region43: #{gsa_forward.3} parent=5 // pred_region
      %s804 = ssub.s32 %s10, 2
      // Predicated region
      $region45: #{gsa_forward.3} parent=43 // pred_check
        %p805 = pneg %p149
      $region46: #{gsa_forward.3} parent=43 // pred_check_branch
        %807 = sbr.rel (%p805) target = $region48
      $region47: #{gsa_forward.3} parent=43 // pred_region
        %p808 = scmp.lt.s32.totalorder %s21, 1
        %s809 = scalar_select %p808, %s21, 1
        %p810 = scmp.lt.s32.totalorder %s22, 0
        %s811 = scalar_select %p810, %s22, 0
        %s812 = smul.addr %s809, 4
        %s813 = sadd.s32 %s811, %s812
        %s814 = smul.addr %s813, 8
        %s815 = scalar_lea.vmem %s4, %s814
      $region48: #{gsa_forward.3} parent=43 // pred_fallthru
        _
    $region44: #{gsa_forward.3} parent=5 // pred_fallthru
      _
  $region6: #{gsa_forward.3} parent=0 // loop_footer
    %s14 = sadd.s32 1, %s10
  $region7: #{gsa_forward.3} parent=0 // loop_footer_branch
    %9 = sbr.rel target = $region3
  $region8: #{gsa_forward.3} parent=0 // loop_exit
    _

</llo_original>
